<compile_context>
chip_gen: v7x
topology: tpu7x:2x2x1
jax: 0.10.0
libtpu: 0.0.40
codegen_flags: <defaults>
</compile_context>

<pallas_src>
import functools

import jax
import jax.numpy as jnp
from jax.experimental import pallas as pl
from jax.experimental.pallas import tpu as pltpu


def _round_up(n, m):
    return -(-n // m) * m


# ---------------------------------------------------------------------------
# Kernel: one batch tile per grid step.  All matmuls have tb rows on the LHS,
# all column widths are multiples of 128, accumulation is f32.
# ---------------------------------------------------------------------------
def _lenet_kernel(x_ref, a1_ref, b1_ref, a2_ref, b2_ref,
                  f1w_ref, f1b_ref, f2w_ref, f2b_ref, f3w_ref, f3b_ref,
                  out_ref, *, n1, n2):
    f32 = jnp.float32
    cdt = a1_ref.dtype                       # matmul input dtype (f32 or bf16)

    x = x_ref[...].astype(cdt)                                       # (tb, L)

    # conv1 + bias + ReLU + MaxPool(2,2): ONE matmul; even/odd halves are
    # lane-aligned (each half padded to n1 = mult of 128 columns).
    h1 = jnp.dot(x, a1_ref[...], preferred_element_type=f32)         # (tb,2n1)
    p1 = jnp.maximum(jnp.maximum(h1[:, :n1], h1[:, n1:]) + b1_ref[...], 0.0)

    # conv2 + bias + ReLU + MaxPool(2,2), same structure.
    h2 = jnp.dot(p1.astype(cdt), a2_ref[...], preferred_element_type=f32)
    p2 = jnp.maximum(jnp.maximum(h2[:, :n2], h2[:, n2:]) + b2_ref[...], 0.0)

    # classifier: (tb,256)@(256,128) -> (tb,128)@(128,128) -> (tb,128)@(128,OUT_PAD)
    z = jnp.maximum(jnp.dot(p2.astype(cdt), f1w_ref[...],
                            preferred_element_type=f32) + f1b_ref[...], 0.0)
    z = jnp.maximum(jnp.dot(z.astype(cdt), f2w_ref[...],
                            preferred_element_type=f32) + f2b_ref[...], 0.0)
    y = jnp.dot(z.astype(cdt), f3w_ref[...],
                preferred_element_type=f32) + f3b_ref[...]
    out_ref[...] = y.astype(out_ref.dtype)                       # (tb, OUT_PAD)


# ---------------------------------------------------------------------------
# Wrapper-side weight preparation (runs ONCE, in make_lenet_forward).
# ---------------------------------------------------------------------------
def _fused_conv_pool_weight(w, l_in, p_out, offset):
    """Fused valid-Conv1d + pool-position-select matrix.

    w: (Cout, Cin, K).  Returns A of shape (Cin*l_in, Cout*p_out) with
        A[ci*l_in + j, co*p_out + p] = w[co, ci, j - (2p + offset)]
    whenever 0 <= j - (2p+offset) < K, else 0.  For h flat-indexed as (ci, j):
        (h @ A)[b, co*p_out + p] == conv1d(h)[b, co, 2p + offset].
    """
    cout, cin, k = w.shape
    j = jnp.arange(l_in)[:, None]                    # (l_in, 1)
    p = jnp.arange(p_out)[None, :]                   # (1, p_out)
    tap = j - (2 * p + offset)                       # (l_in, p_out)
    valid = (tap >= 0) & (tap < k)
    tap_c = jnp.clip(tap, 0, k - 1)
    wt = w[:, :, tap_c]                              # (Cout, Cin, l_in, p_out)
    wt = jnp.where(valid[None, None, :, :], wt, 0.0)
    return jnp.transpose(wt, (1, 2, 0, 3)).reshape(cin * l_in, cout * p_out)


def make_lenet_forward(params, input_size, *, tb=256,
                       matmul_dtype=jnp.bfloat16):
    """Prepare fused/padded weights once and return a jitted forward(x)."""
    (w1, b1, w2, b2, f1w, f1b, f2w, f2b, f3w, f3b) = params
    f32 = jnp.float32
    L = input_size
    K = w1.shape[-1]
    C1, C2 = w1.shape[0], w2.shape[0]
    L1 = L - K + 1
    P1 = L1 // 2                       # MaxPool1d floor, matches PyTorch
    L2 = P1 - K + 1
    P2 = L2 // 2
    F1, F2 = f1w.shape[0], f2w.shape[0]
    OUT = f3w.shape[0]
    assert f1w.shape[1] == C2 * P2, "flattened size mismatch"
    assert L1 >= 1 and L2 >= 1
    assert tb % 8 == 0

    # padded inter-stage widths (multiples of 128 lanes)
    n1 = _round_up(C1 * P1, 128)            # 180 -> 256
    n2 = _round_up(C2 * P2, 128)            # 208 -> 256
    F1p = _round_up(F1, 128)                # 120 -> 128
    F2p = _round_up(F2, 128)                #  84 -> 128
    OUT_PAD = max(128, _round_up(OUT, 128))

    # --- fused conv+pool matrices, concatenated even|odd, 128-aligned halves
    A1e = _fused_conv_pool_weight(w1.astype(f32), L, P1, 0)     # (L, C1*P1)
    A1o = _fused_conv_pool_weight(w1.astype(f32), L, P1, 1)
    A1 = jnp.zeros((L, 2 * n1), f32)
    A1 = A1.at[:, :C1 * P1].set(A1e).at[:, n1:n1 + C1 * P1].set(A1o)
    b1f = jnp.zeros((1, n1), f32).at[0, :C1 * P1].set(
        jnp.repeat(b1.astype(f32), P1))

    A2e = _fused_conv_pool_weight(w2.astype(f32), P1, P2, 0)    # (C1*P1, C2*P2)
    A2o = _fused_conv_pool_weight(w2.astype(f32), P1, P2, 1)
    A2 = jnp.zeros((n1, 2 * n2), f32)
    A2 = A2.at[:C1 * P1, :C2 * P2].set(A2e)
    A2 = A2.at[:C1 * P1, n2:n2 + C2 * P2].set(A2o)
    b2f = jnp.zeros((1, n2), f32).at[0, :C2 * P2].set(
        jnp.repeat(b2.astype(f32), P2))

    # --- classifier weights, zero-padded to whole lane tiles ----------------
    kf1w = jnp.zeros((n2, F1p), f32).at[:C2 * P2, :F1].set(
        jnp.transpose(f1w, (1, 0)).astype(f32))
    kf1b = jnp.zeros((1, F1p), f32).at[0, :F1].set(f1b.astype(f32))
    kf2w = jnp.zeros((F1p, F2p), f32).at[:F1, :F2].set(
        jnp.transpose(f2w, (1, 0)).astype(f32))
    kf2b = jnp.zeros((1, F2p), f32).at[0, :F2].set(f2b.astype(f32))
    kf3w = jnp.zeros((F2p, OUT_PAD), f32).at[:F2, :OUT].set(
        jnp.transpose(f3w, (1, 0)).astype(f32))
    kf3b = jnp.zeros((1, OUT_PAD), f32).at[0, :OUT].set(f3b.astype(f32))

    # matmul inputs in matmul_dtype (bf16 on MXU), biases stay f32
    mdt = matmul_dtype
    weights = (A1.astype(mdt), b1f, A2.astype(mdt), b2f,
               kf1w.astype(mdt), kf1b, kf2w.astype(mdt), kf2b,
               kf3w.astype(mdt), kf3b)
    weights = tuple(jax.device_put(w) for w in weights)

    kernel = functools.partial(_lenet_kernel, n1=n1, n2=n2)

    mm_dims = [(L, 2 * n1), (n1, 2 * n2), (n2, F1p), (F1p, F2p), (F2p, OUT_PAD)]
    weight_bytes = sum(int(w.size) * w.dtype.itemsize for w in weights)

    @jax.jit
    def forward(x):
        """x: (B, 1, L) float32 -> (B, OUT) float32."""
        B, cin, Lx = x.shape
        assert cin == 1 and Lx == L

        # Pick the batch tile: honor `tb`, but shrink it so the batch axis has
        # >= 2 grid steps when possible (keeps both v7x TensorCores busy).
        tb_eff = min(tb, max(8, _round_up(pl.cdiv(B, 2), 8)))
        B_pad = _round_up(B, tb_eff)
        grid = (B_pad // tb_eff,)

        xp = x.reshape(B, L).astype(jnp.float32)
        if B_pad != B:
            xp = jnp.pad(xp, ((0, B_pad - B), (0, 0)))

        def full(a):  # whole-array resident block (constant index_map)
            return pl.BlockSpec(a.shape, lambda i: (0, 0))

        flops = 2 * B_pad * sum(a * b for a, b in mm_dims)
        cost = pl.CostEstimate(
            flops=int(flops), transcendentals=0,
            bytes_accessed=int(4 * B_pad * (L + OUT_PAD) + weight_bytes))

        out = pl.pallas_call(
            kernel,
            out_shape=jax.ShapeDtypeStruct((B_pad, OUT_PAD), jnp.float32),
            grid=grid,
            in_specs=[pl.BlockSpec((tb_eff, L), lambda i: (i, 0))]
                     + [full(a) for a in weights],
            out_specs=pl.BlockSpec((tb_eff, OUT_PAD), lambda i: (i, 0)),
            compiler_params=pltpu.CompilerParams(
                dimension_semantics=("parallel",)),
            cost_estimate=cost,
        )(xp, *weights)

        # Slice fuses into the consumer under jit (no eager HBM round trip).
        return out[:B, :OUT]

    return forward


# ---------------------------------------------------------------------------
# Pure-JAX reference matching the PyTorch forward exactly.
# ---------------------------------------------------------------------------
def lenet_ref(x, params):
    (w1, b1, w2, b2, f1w, f1b, f2w, f2b, f3w, f3b) = params

    def conv1d(h, w, b):
        dn = jax.lax.conv_dimension_numbers(h.shape, w.shape,
                                            ('NCH', 'OIH', 'NCH'))
        return jax.lax.conv_general_dilated(h, w, (1,), 'VALID',
                                            dimension_numbers=dn) \
            + b[None, :, None]

    def pool(h):
        B, C, L = h.shape
        return jnp.max(h[:, :, :(L // 2) * 2].reshape(B, C, L // 2, 2), axis=-1)

    h = pool(jnp.maximum(conv1d(x, w1, b1), 0.0))
    h = pool(jnp.maximum(conv1d(h, w2, b2), 0.0))
    h = h.reshape(h.shape[0], -1)
    h = jnp.maximum(h @ f1w.T + f1b, 0.0)
    h = jnp.maximum(h @ f2w.T + f2b, 0.0)
    return h @ f3w.T + f3b


if __name__ == "__main__":
    INPUT_SIZE = 64
    OUTPUT_SIZE = 10
    BATCH = 2

    # derived sizes (same arithmetic as LeNet._get_flattened_size)
    _L1 = INPUT_SIZE - 4
    _P1 = _L1 // 2
    _L2 = _P1 - 4
    _P2 = _L2 // 2
    FLAT = 16 * _P2                      # 208 for input_size=64

    key = jax.random.PRNGKey(0)
    keys = jax.random.split(key, 11)

    def uinit(k, shape, fan_in):
        bound = 1.0 / (fan_in ** 0.5)
        return jax.random.uniform(k, shape, jnp.float32, -bound, bound)

    # deterministic synthetic parameters, PyTorch layouts/shapes
    params = (
        uinit(keys[0], (6, 1, 5), 1 * 5),          # conv1 weight (O,I,K)
        uinit(keys[1], (6,), 1 * 5),               # conv1 bias
        uinit(keys[2], (16, 6, 5), 6 * 5),         # conv2 weight
        uinit(keys[3], (16,), 6 * 5),              # conv2 bias
        uinit(keys[4], (120, FLAT), FLAT),         # fc1 weight (out,in)
        uinit(keys[5], (120,), FLAT),              # fc1 bias
        uinit(keys[6], (84, 120), 120),            # fc2 weight
        uinit(keys[7], (84,), 120),                # fc2 bias
        uinit(keys[8], (OUTPUT_SIZE, 84), 84),     # fc3 weight
        uinit(keys[9], (OUTPUT_SIZE,), 84),        # fc3 bias
    )

    x = jax.random.normal(keys[10], (BATCH, 1, INPUT_SIZE), jnp.float32)
    y_ref = lenet_ref(x, params)

    # f32-matmul variant: strict numeric check against the reference.
    fwd_f32 = make_lenet_forward(params, INPUT_SIZE, tb=256,
                                 matmul_dtype=jnp.float32)
    y32 = jax.block_until_ready(fwd_f32(x))
    assert y32.shape == (BATCH, OUTPUT_SIZE)
    assert jnp.allclose(y32, y_ref, atol=1e-4, rtol=1e-4), (y32, y_ref)

    # bf16-matmul variant (production path on v5e/v6e/v7x): looser tolerance.
    fwd_bf16 = make_lenet_forward(params, INPUT_SIZE, tb=256,
                                  matmul_dtype=jnp.bfloat16)
    y16 = jax.block_until_ready(fwd_bf16(x))
    assert y16.shape == (BATCH, OUTPUT_SIZE)
    assert jnp.allclose(y16, y_ref, atol=5e-2, rtol=5e-2), (y16, y_ref)

    print("KERNEL_OK")
</pallas_src>

<mosaic_0001>
module attributes {stable_mosaic.version = 11 : i64} {
  func.func @_lenet_kernel(%arg0: i32, %arg1: memref<8x64xf32, #tpu.memory_space<vmem>>, %arg2: memref<64x512xf32, #tpu.memory_space<vmem>>, %arg3: memref<1x256xf32, #tpu.memory_space<vmem>>, %arg4: memref<256x512xf32, #tpu.memory_space<vmem>>, %arg5: memref<1x256xf32, #tpu.memory_space<vmem>>, %arg6: memref<256x128xf32, #tpu.memory_space<vmem>>, %arg7: memref<1x128xf32, #tpu.memory_space<vmem>>, %arg8: memref<128x128xf32, #tpu.memory_space<vmem>>, %arg9: memref<1x128xf32, #tpu.memory_space<vmem>>, %arg10: memref<128x128xf32, #tpu.memory_space<vmem>>, %arg11: memref<1x128xf32, #tpu.memory_space<vmem>>, %arg12: memref<8x128xf32, #tpu.memory_space<vmem>>) attributes {dimension_semantics = [#tpu.dimension_semantics<parallel>], iteration_bounds = array<i64: 1>, scalar_prefetch = 0 : i64, scratch_operands = 0 : i64, tpu.core_type = #tpu.core_type<tc>, window_params = [{transform_indices = @transform_0, window_bounds = array<i64: 8, 64>}, {pipeline_mode = #tpu.pipeline_mode<synchronous>, transform_indices = @transform_1, window_bounds = array<i64: 64, 512>}, {pipeline_mode = #tpu.pipeline_mode<synchronous>, transform_indices = @transform_2, window_bounds = array<i64: 1, 256>}, {pipeline_mode = #tpu.pipeline_mode<synchronous>, transform_indices = @transform_3, window_bounds = array<i64: 256, 512>}, {pipeline_mode = #tpu.pipeline_mode<synchronous>, transform_indices = @transform_4, window_bounds = array<i64: 1, 256>}, {pipeline_mode = #tpu.pipeline_mode<synchronous>, transform_indices = @transform_5, window_bounds = array<i64: 256, 128>}, {pipeline_mode = #tpu.pipeline_mode<synchronous>, transform_indices = @transform_6, window_bounds = array<i64: 1, 128>}, {pipeline_mode = #tpu.pipeline_mode<synchronous>, transform_indices = @transform_7, window_bounds = array<i64: 128, 128>}, {pipeline_mode = #tpu.pipeline_mode<synchronous>, transform_indices = @transform_8, window_bounds = array<i64: 1, 128>}, {pipeline_mode = #tpu.pipeline_mode<synchronous>, transform_indices = @transform_9, window_bounds = array<i64: 128, 128>}, {pipeline_mode = #tpu.pipeline_mode<synchronous>, transform_indices = @transform_10, window_bounds = array<i64: 1, 128>}, {transform_indices = @transform_11, window_bounds = array<i64: 8, 128>}]} {
    %c0 = arith.constant 0 : index
    %c0_0 = arith.constant 0 : index
    %0 = vector.load %arg1[%c0, %c0_0] : memref<8x64xf32, #tpu.memory_space<vmem>>, vector<8x64xf32>
    %c0_1 = arith.constant 0 : index
    %c0_2 = arith.constant 0 : index
    %1 = vector.load %arg2[%c0_1, %c0_2] : memref<64x512xf32, #tpu.memory_space<vmem>>, vector<64x512xf32>
    %cst = arith.constant dense<0.000000e+00> : vector<8x512xf32>
    %2 = tpu.matmul %0, %1, %cst {dimension_numbers = #tpu.dot_dimension_numbers<[1], [0], [0], [1], [0, 0, 1, 1], [], []>} : vector<8x64xf32>, vector<64x512xf32>, vector<8x512xf32> -> vector<8x512xf32>
    %3 = vector.extract_strided_slice %2 {offsets = [0, 0], sizes = [8, 256], strides = [1, 1]} : vector<8x512xf32> to vector<8x256xf32>
    %4 = vector.extract_strided_slice %2 {offsets = [0, 256], sizes = [8, 256], strides = [1, 1]} : vector<8x512xf32> to vector<8x256xf32>
    %5 = arith.maximumf %3, %4 : vector<8x256xf32>
    %c0_3 = arith.constant 0 : index
    %c0_4 = arith.constant 0 : index
    %6 = vector.load %arg3[%c0_3, %c0_4] : memref<1x256xf32, #tpu.memory_space<vmem>>, vector<1x256xf32>
    %7 = vector.broadcast %6 : vector<1x256xf32> to vector<8x256xf32>
    %8 = arith.addf %5, %7 : vector<8x256xf32>
    %cst_5 = arith.constant 0.000000e+00 : f32
    %9 = vector.broadcast %cst_5 : f32 to vector<8x256xf32>
    %10 = arith.maximumf %8, %9 : vector<8x256xf32>
    %c0_6 = arith.constant 0 : index
    %c0_7 = arith.constant 0 : index
    %11 = vector.load %arg4[%c0_6, %c0_7] : memref<256x512xf32, #tpu.memory_space<vmem>>, vector<256x512xf32>
    %cst_8 = arith.constant dense<0.000000e+00> : vector<8x512xf32>
    %12 = tpu.matmul %10, %11, %cst_8 {dimension_numbers = #tpu.dot_dimension_numbers<[1], [0], [0], [1], [0, 0, 1, 1], [], []>} : vector<8x256xf32>, vector<256x512xf32>, vector<8x512xf32> -> vector<8x512xf32>
    %13 = vector.extract_strided_slice %12 {offsets = [0, 0], sizes = [8, 256], strides = [1, 1]} : vector<8x512xf32> to vector<8x256xf32>
    %14 = vector.extract_strided_slice %12 {offsets = [0, 256], sizes = [8, 256], strides = [1, 1]} : vector<8x512xf32> to vector<8x256xf32>
    %15 = arith.maximumf %13, %14 : vector<8x256xf32>
    %c0_9 = arith.constant 0 : index
    %c0_10 = arith.constant 0 : index
    %16 = vector.load %arg5[%c0_9, %c0_10] : memref<1x256xf32, #tpu.memory_space<vmem>>, vector<1x256xf32>
    %17 = vector.broadcast %16 : vector<1x256xf32> to vector<8x256xf32>
    %18 = arith.addf %15, %17 : vector<8x256xf32>
    %cst_11 = arith.constant 0.000000e+00 : f32
    %19 = vector.broadcast %cst_11 : f32 to vector<8x256xf32>
    %20 = arith.maximumf %18, %19 : vector<8x256xf32>
    %c0_12 = arith.constant 0 : index
    %c0_13 = arith.constant 0 : index
    %21 = vector.load %arg6[%c0_12, %c0_13] : memref<256x128xf32, #tpu.memory_space<vmem>>, vector<256x128xf32>
    %cst_14 = arith.constant dense<0.000000e+00> : vector<8x128xf32>
    %22 = tpu.matmul %20, %21, %cst_14 {dimension_numbers = #tpu.dot_dimension_numbers<[1], [0], [0], [1], [0, 0, 1, 1], [], []>} : vector<8x256xf32>, vector<256x128xf32>, vector<8x128xf32> -> vector<8x128xf32>
    %c0_15 = arith.constant 0 : index
    %c0_16 = arith.constant 0 : index
    %23 = vector.load %arg7[%c0_15, %c0_16] : memref<1x128xf32, #tpu.memory_space<vmem>>, vector<1x128xf32>
    %24 = vector.broadcast %23 : vector<1x128xf32> to vector<8x128xf32>
    %25 = arith.addf %22, %24 : vector<8x128xf32>
    %cst_17 = arith.constant 0.000000e+00 : f32
    %26 = vector.broadcast %cst_17 : f32 to vector<8x128xf32>
    %27 = arith.maximumf %25, %26 : vector<8x128xf32>
    %c0_18 = arith.constant 0 : index
    %c0_19 = arith.constant 0 : index
    %28 = vector.load %arg8[%c0_18, %c0_19] : memref<128x128xf32, #tpu.memory_space<vmem>>, vector<128x128xf32>
    %cst_20 = arith.constant dense<0.000000e+00> : vector<8x128xf32>
    %29 = tpu.matmul %27, %28, %cst_20 {dimension_numbers = #tpu.dot_dimension_numbers<[1], [0], [0], [1], [0, 0, 1, 1], [], []>} : vector<8x128xf32>, vector<128x128xf32>, vector<8x128xf32> -> vector<8x128xf32>
    %c0_21 = arith.constant 0 : index
    %c0_22 = arith.constant 0 : index
    %30 = vector.load %arg9[%c0_21, %c0_22] : memref<1x128xf32, #tpu.memory_space<vmem>>, vector<1x128xf32>
    %31 = vector.broadcast %30 : vector<1x128xf32> to vector<8x128xf32>
    %32 = arith.addf %29, %31 : vector<8x128xf32>
    %cst_23 = arith.constant 0.000000e+00 : f32
    %33 = vector.broadcast %cst_23 : f32 to vector<8x128xf32>
    %34 = arith.maximumf %32, %33 : vector<8x128xf32>
    %c0_24 = arith.constant 0 : index
    %c0_25 = arith.constant 0 : index
    %35 = vector.load %arg10[%c0_24, %c0_25] : memref<128x128xf32, #tpu.memory_space<vmem>>, vector<128x128xf32>
    %cst_26 = arith.constant dense<0.000000e+00> : vector<8x128xf32>
    %36 = tpu.matmul %34, %35, %cst_26 {dimension_numbers = #tpu.dot_dimension_numbers<[1], [0], [0], [1], [0, 0, 1, 1], [], []>} : vector<8x128xf32>, vector<128x128xf32>, vector<8x128xf32> -> vector<8x128xf32>
    %c0_27 = arith.constant 0 : index
    %c0_28 = arith.constant 0 : index
    %37 = vector.load %arg11[%c0_27, %c0_28] : memref<1x128xf32, #tpu.memory_space<vmem>>, vector<1x128xf32>
    %38 = vector.broadcast %37 : vector<1x128xf32> to vector<8x128xf32>
    %39 = arith.addf %36, %38 : vector<8x128xf32>
    %c0_29 = arith.constant 0 : index
    %c0_30 = arith.constant 0 : index
    %40 = vector.load %arg12[%c0_29, %c0_30] : memref<8x128xf32, #tpu.memory_space<vmem>>, vector<8x128xf32>
    tpu.vector_store %arg12[%c0_29, %c0_30], %39 {strides = array<i32>} : memref<8x128xf32, #tpu.memory_space<vmem>>, vector<8x128xf32>,
    return
  }
  func.func @transform_0(%arg0: i32) -> (i32, i32) {
    %c0_i32 = arith.constant 0 : i32
    %c0_i32_0 = arith.constant 0 : i32
    return %arg0, %c0_i32 : i32, i32
  }
  func.func @transform_1(%arg0: i32) -> (i32, i32) {
    %c0_i32 = arith.constant 0 : i32
    %c0_i32_0 = arith.constant 0 : i32
    %c0_i32_1 = arith.constant 0 : i32
    return %c0_i32, %c0_i32_0 : i32, i32
  }
  func.func @transform_2(%arg0: i32) -> (i32, i32) {
    %c0_i32 = arith.constant 0 : i32
    %c0_i32_0 = arith.constant 0 : i32
    %c0_i32_1 = arith.constant 0 : i32
    return %c0_i32, %c0_i32_0 : i32, i32
  }
  func.func @transform_3(%arg0: i32) -> (i32, i32) {
    %c0_i32 = arith.constant 0 : i32
    %c0_i32_0 = arith.constant 0 : i32
    %c0_i32_1 = arith.constant 0 : i32
    return %c0_i32, %c0_i32_0 : i32, i32
  }
  func.func @transform_4(%arg0: i32) -> (i32, i32) {
    %c0_i32 = arith.constant 0 : i32
    %c0_i32_0 = arith.constant 0 : i32
    %c0_i32_1 = arith.constant 0 : i32
    return %c0_i32, %c0_i32_0 : i32, i32
  }
  func.func @transform_5(%arg0: i32) -> (i32, i32) {
    %c0_i32 = arith.constant 0 : i32
    %c0_i32_0 = arith.constant 0 : i32
    %c0_i32_1 = arith.constant 0 : i32
    return %c0_i32, %c0_i32_0 : i32, i32
  }
  func.func @transform_6(%arg0: i32) -> (i32, i32) {
    %c0_i32 = arith.constant 0 : i32
    %c0_i32_0 = arith.constant 0 : i32
    %c0_i32_1 = arith.constant 0 : i32
    return %c0_i32, %c0_i32_0 : i32, i32
  }
  func.func @transform_7(%arg0: i32) -> (i32, i32) {
    %c0_i32 = arith.constant 0 : i32
    %c0_i32_0 = arith.constant 0 : i32
    %c0_i32_1 = arith.constant 0 : i32
    return %c0_i32, %c0_i32_0 : i32, i32
  }
  func.func @transform_8(%arg0: i32) -> (i32, i32) {
    %c0_i32 = arith.constant 0 : i32
    %c0_i32_0 = arith.constant 0 : i32
    %c0_i32_1 = arith.constant 0 : i32
    return %c0_i32, %c0_i32_0 : i32, i32
  }
  func.func @transform_9(%arg0: i32) -> (i32, i32) {
    %c0_i32 = arith.constant 0 : i32
    %c0_i32_0 = arith.constant 0 : i32
    %c0_i32_1 = arith.constant 0 : i32
    return %c0_i32, %c0_i32_0 : i32, i32
  }
  func.func @transform_10(%arg0: i32) -> (i32, i32) {
    %c0_i32 = arith.constant 0 : i32
    %c0_i32_0 = arith.constant 0 : i32
    %c0_i32_1 = arith.constant 0 : i32
    return %c0_i32, %c0_i32_0 : i32, i32
  }
  func.func @transform_11(%arg0: i32) -> (i32, i32) {
    %c0_i32 = arith.constant 0 : i32
    %c0_i32_0 = arith.constant 0 : i32
    return %arg0, %c0_i32 : i32, i32
  }
}

</mosaic_0001>

<llo_original>
// kernel: forward.1
$region0: #{forward.1}
  #allocation0 [shape = 'u32[]', space=smem, size = 0x4, offset = 0x4, fixed_abs, tag = 'smem constant byte address 0x4 - core index']
  #allocation1 [shape = 'u32[144,128]{1,0:T(1,128)}', space=vmem, size = 0x12000, scoped, tag = 'internal scratch']
  %s0 = inlined_call_operand.vmem [shape: f32[8,64], index: 0, kind: input, shape index: {}]
  %s1 = inlined_call_operand.hbm [shape: f32[64,512], index: 1, kind: input, shape index: {}]
  %s2 = inlined_call_operand.vmem [shape: f32[1,256], index: 2, kind: input, shape index: {}]
  %s3 = inlined_call_operand.hbm [shape: f32[256,512], index: 3, kind: input, shape index: {}]
  %s4 = inlined_call_operand.vmem [shape: f32[1,256], index: 4, kind: input, shape index: {}]
  %s5 = inlined_call_operand.hbm [shape: f32[256,128], index: 5, kind: input, shape index: {}]
  %s6 = inlined_call_operand.vmem [shape: f32[1,128], index: 6, kind: input, shape index: {}]
  %s7 = inlined_call_operand.hbm [shape: f32[128,128], index: 7, kind: input, shape index: {}]
  %s8 = inlined_call_operand.vmem [shape: f32[1,128], index: 8, kind: input, shape index: {}]
  %s9 = inlined_call_operand.hbm [shape: f32[128,128], index: 9, kind: input, shape index: {}]
  %s10 = inlined_call_operand.vmem [shape: f32[1,128], index: 10, kind: input, shape index: {}]
  %s11 = inlined_call_operand.vmem [shape: f32[8,128], index: 11, kind: output, shape index: {}]
  %s12 = sld [smem:[#allocation0]]
  $region74: #{forward.1} parent=0
    _
  %s14 = ssub.s32 1, %s12
  %s15 = scalar_select 0, %s14, %s12
  $region1: #{forward.1} parent=0
    #allocation2 [shape = 'u8[131072]{0}', space=vmem, size = 0x20000, scoped, tag = 'input window, operand 1, single buffered']
    #allocation3 [shape = 's32[1]{0}', space=sflag, size = 0x4, scoped, tag = 'scoped memory for forward.1']
    #allocation4 [shape = 'u8[524288]{0}', space=vmem, size = 0x80000, scoped, tag = 'input window, operand 3, single buffered']
    #allocation5 [shape = 's32[1]{0}', space=sflag, size = 0x4, scoped, tag = 'scoped memory for forward.1']
    #allocation6 [shape = 'u8[131072]{0}', space=vmem, size = 0x20000, scoped, tag = 'input window, operand 5, single buffered']
    #allocation7 [shape = 'u8[65536]{0}', space=vmem, size = 0x10000, scoped, tag = 'input window, operand 7, single buffered']
    #allocation8 [shape = 's32[1]{0}', space=sflag, size = 0x4, scoped, tag = 'scoped memory for forward.1']
    #allocation9 [shape = 'u8[65536]{0}', space=vmem, size = 0x10000, scoped, tag = 'input window, operand 9, single buffered']
    %16 = vsyncpa [#allocation3], 0
    %17 = vsyncpa [#allocation5], 0
    %18 = vsyncpa [#allocation8], 0
    // Predicated region
    $region2: #{forward.1} parent=1 // pred_check
      _
    $region3: #{forward.1} parent=1 // pred_check_branch
      %20 = sbr.rel (0) target = $region5
    $region4: #{forward.1} parent=1 // pred_region
      _
    $region5: #{forward.1} parent=1 // pred_fallthru
      _
    // Predicated region
    $region6: #{forward.1} parent=1 // pred_check
      _
    $region7: #{forward.1} parent=1 // pred_check_branch
      %22 = sbr.rel (0) target = $region9
    $region8: #{forward.1} parent=1 // pred_region
      %s24 = ssub.s32 4096, 4096
      %25 = vsyncadd [#allocation3], %s24
      %s26 = sshll.u32 [#allocation2], 4
      %s27 = int_to_ptr.vmem [resolvable:$true] %s26
      %32 = dma.hbm_to_vmem [thread:$0]  %s1, 4096, %s27, [#allocation3], 512, 512, 32
    $region9: #{forward.1} parent=1 // pred_fallthru
      _
    // Predicated region
    $region10: #{forward.1} parent=1 // pred_check
      _
    $region11: #{forward.1} parent=1 // pred_check_branch
      %34 = sbr.rel (0) target = $region13
    $region12: #{forward.1} parent=1 // pred_region
      _
    $region13: #{forward.1} parent=1 // pred_fallthru
      _
    // Predicated region
    $region14: #{forward.1} parent=1 // pred_check
      _
    $region15: #{forward.1} parent=1 // pred_check_branch
      %36 = sbr.rel (0) target = $region17
    $region16: #{forward.1} parent=1 // pred_region
      %s38 = ssub.s32 16384, 16384
      %39 = vsyncadd [#allocation5], %s38
      %s40 = sshll.u32 [#allocation4], 4
      %s41 = int_to_ptr.vmem [resolvable:$true] %s40
      %46 = dma.hbm_to_vmem [thread:$0]  %s3, 16384, %s41, [#allocation5], 512, 512, 32
    $region17: #{forward.1} parent=1 // pred_fallthru
      _
    // Predicated region
    $region18: #{forward.1} parent=1 // pred_check
      _
    $region19: #{forward.1} parent=1 // pred_check_branch
      %48 = sbr.rel (0) target = $region21
    $region20: #{forward.1} parent=1 // pred_region
      _
    $region21: #{forward.1} parent=1 // pred_fallthru
      _
    // Predicated region
    $region22: #{forward.1} parent=1 // pred_check
      _
    $region23: #{forward.1} parent=1 // pred_check_branch
      %50 = sbr.rel (0) target = $region25
    $region24: #{forward.1} parent=1 // pred_region
      %s52 = ssub.s32 4096, 4096
      %53 = vsyncadd [#allocation5], %s52
      %s54 = sshll.u32 [#allocation6], 4
      %s55 = int_to_ptr.vmem [resolvable:$true] %s54
      %60 = dma.hbm_to_vmem [thread:$0]  %s5, 4096, %s55, [#allocation5], 128, 128, 8
    $region25: #{forward.1} parent=1 // pred_fallthru
      _
    // Predicated region
    $region26: #{forward.1} parent=1 // pred_check
      _
    $region27: #{forward.1} parent=1 // pred_check_branch
      %62 = sbr.rel (0) target = $region29
    $region28: #{forward.1} parent=1 // pred_region
      _
    $region29: #{forward.1} parent=1 // pred_fallthru
      _
    // Predicated region
    $region30: #{forward.1} parent=1 // pred_check
      _
    $region31: #{forward.1} parent=1 // pred_check_branch
      %64 = sbr.rel (0) target = $region33
    $region32: #{forward.1} parent=1 // pred_region
      %s66 = ssub.s32 2048, 2048
      %67 = vsyncadd [#allocation8], %s66
      %s68 = sshll.u32 [#allocation7], 4
      %s69 = int_to_ptr.vmem [resolvable:$true] %s68
      %74 = dma.hbm_to_vmem [thread:$0]  %s7, 2048, %s69, [#allocation8], 128, 128, 8
    $region33: #{forward.1} parent=1 // pred_fallthru
      _
    // Predicated region
    $region34: #{forward.1} parent=1 // pred_check
      _
    $region35: #{forward.1} parent=1 // pred_check_branch
      %76 = sbr.rel (0) target = $region37
    $region36: #{forward.1} parent=1 // pred_region
      _
    $region37: #{forward.1} parent=1 // pred_fallthru
      _
    // Predicated region
    $region38: #{forward.1} parent=1 // pred_check
      _
    $region39: #{forward.1} parent=1 // pred_check_branch
      %78 = sbr.rel (0) target = $region41
    $region40: #{forward.1} parent=1 // pred_region
      %s80 = ssub.s32 2048, 2048
      %81 = vsyncadd [#allocation8], %s80
      %s82 = sshll.u32 [#allocation9], 4
      %s83 = int_to_ptr.vmem [resolvable:$true] %s82
      %88 = dma.hbm_to_vmem [thread:$0]  %s9, 2048, %s83, [#allocation8], 128, 128, 8
    $region41: #{forward.1} parent=1 // pred_fallthru
      _
    // Predicated region
    $region42: #{forward.1} parent=1 // pred_check
      _
    $region43: #{forward.1} parent=1 // pred_check_branch
      %90 = sbr.rel (0) target = $region45
    $region44: #{forward.1} parent=1 // pred_region
      _
    $region45: #{forward.1} parent=1 // pred_fallthru
      _
    // Predicated region
    $region46: #{forward.1} parent=1 // pred_check
      _
    $region47: #{forward.1} parent=1 // pred_check_branch
      %92 = sbr.rel (0) target = $region49
    $region48: #{forward.1} parent=1 // pred_region
      %93 = dma.done [#allocation3], 4096
    $region49: #{forward.1} parent=1 // pred_fallthru
      _
    // Predicated region
    $region50: #{forward.1} parent=1 // pred_check
      _
    $region51: #{forward.1} parent=1 // pred_check_branch
      %95 = sbr.rel (0) target = $region53
    $region52: #{forward.1} parent=1 // pred_region
      %96 = dma.done [#allocation5], 16384
    $region53: #{forward.1} parent=1 // pred_fallthru
      _
    // Predicated region
    $region54: #{forward.1} parent=1 // pred_check
      _
    $region55: #{forward.1} parent=1 // pred_check_branch
      %98 = sbr.rel (0) target = $region57
    $region56: #{forward.1} parent=1 // pred_region
      %99 = dma.done [#allocation5], 4096
    $region57: #{forward.1} parent=1 // pred_fallthru
      _
    // Predicated region
    $region58: #{forward.1} parent=1 // pred_check
      _
    $region59: #{forward.1} parent=1 // pred_check_branch
      %101 = sbr.rel (0) target = $region61
    $region60: #{forward.1} parent=1 // pred_region
      %102 = dma.done [#allocation8], 2048
    $region61: #{forward.1} parent=1 // pred_fallthru
      _
    // Predicated region
    $region62: #{forward.1} parent=1 // pred_check
      _
    $region63: #{forward.1} parent=1 // pred_check_branch
      %104 = sbr.rel (0) target = $region65
    $region64: #{forward.1} parent=1 // pred_region
      %105 = dma.done [#allocation8], 2048
    $region65: #{forward.1} parent=1 // pred_fallthru
      _
    %v106 = vld [vmem:[%s0] sm:$0xff]
    %v107 = vld [vmem:[#allocation2] sm:$0xff]
    %v108 = vld [vmem:[#allocation2 + $0x8] sm:$0xff]
    %v109 = vld [vmem:[#allocation2 + $0x10] sm:$0xff]
    %v110 = vld [vmem:[#allocation2 + $0x18] sm:$0xff]
    %v111 = vld [vmem:[#allocation2 + $0x20] sm:$0xff]
    %v112 = vld [vmem:[#allocation2 + $0x28] sm:$0xff]
    %v113 = vld [vmem:[#allocation2 + $0x30] sm:$0xff]
    %v114 = vld [vmem:[#allocation2 + $0x38] sm:$0xff]
    %v115 = vld [vmem:[#allocation2 + $0x40] sm:$0xff]
    %v116 = vld [vmem:[#allocation2 + $0x48] sm:$0xff]
    %v117 = vld [vmem:[#allocation2 + $0x50] sm:$0xff]
    %v118 = vld [vmem:[#allocation2 + $0x58] sm:$0xff]
    %v119 = vld [vmem:[#allocation2 + $0x60] sm:$0xff]
    %v120 = vld [vmem:[#allocation2 + $0x68] sm:$0xff]
    %v121 = vld [vmem:[#allocation2 + $0x70] sm:$0xff]
    %v122 = vld [vmem:[#allocation2 + $0x78] sm:$0xff]
    %v123 = vld [vmem:[#allocation2 + $0x80] sm:$0xff]
    %v124 = vld [vmem:[#allocation2 + $0x88] sm:$0xff]
    %v125 = vld [vmem:[#allocation2 + $0x90] sm:$0xff]
    %v126 = vld [vmem:[#allocation2 + $0x98] sm:$0xff]
    %v127 = vld [vmem:[#allocation2 + $0xa0] sm:$0xff]
    %v128 = vld [vmem:[#allocation2 + $0xa8] sm:$0xff]
    %v129 = vld [vmem:[#allocation2 + $0xb0] sm:$0xff]
    %v130 = vld [vmem:[#allocation2 + $0xb8] sm:$0xff]
    %v131 = vld [vmem:[#allocation2 + $0xc0] sm:$0xff]
    %v132 = vld [vmem:[#allocation2 + $0xc8] sm:$0xff]
    %v133 = vld [vmem:[#allocation2 + $0xd0] sm:$0xff]
    %v134 = vld [vmem:[#allocation2 + $0xd8] sm:$0xff]
    %v135 = vld [vmem:[#allocation2 + $0xe0] sm:$0xff]
    %v136 = vld [vmem:[#allocation2 + $0xe8] sm:$0xff]
    %v137 = vld [vmem:[#allocation2 + $0xf0] sm:$0xff]
    %v138 = vld [vmem:[#allocation2 + $0xf8] sm:$0xff]
    %vm139 = vcmask 523264
    %v141 = vsel %vm139, %v106, 0
    %143 = vmatprep.subr.mxu0 %v108
    %144 = vmatpush1.msra.mxu0 %v107
    %145 = vmatprep.subr.mxu0 %v112
    %146 = vmatpush1.msra.mxu0 %v111
    %147 = vmatprep.subr.mxu0 %v116
    %148 = vmatpush1.msra.mxu0 %v115
    %149 = vmatprep.subr.mxu0 %v120
    %150 = vmatpush1.msra.mxu0 %v119
    %151 = vmatprep.subr.mxu0 %v124
    %152 = vmatpush1.msra.mxu0 %v123
    %153 = vmatprep.subr.mxu0 %v128
    %154 = vmatpush1.msra.mxu0 %v127
    %155 = vmatprep.subr.mxu0 %v132
    %156 = vmatpush1.msra.mxu0 %v131
    %157 = vmatprep.subr.mxu0 %v136
    %158 = vmatpush1.msra.mxu0 %v135
    %159 = vmatprep.subr.mxu0 0.0
    %160 = vmatpush1.msra.mxu0 0.0
    %161 = vmatprep.subr.mxu0 0.0
    %162 = vmatpush1.msra.mxu0 0.0
    %163 = vmatprep.subr.mxu0 0.0
    %164 = vmatpush1.msra.mxu0 0.0
    %165 = vmatprep.subr.mxu0 0.0
    %166 = vmatpush1.msra.mxu0 0.0
    %167 = vmatprep.subr.mxu0 0.0
    %168 = vmatpush1.msra.mxu0 0.0
    %169 = vmatprep.subr.mxu0 0.0
    %170 = vmatpush1.msra.mxu0 0.0
    %171 = vmatprep.subr.mxu0 0.0
    %172 = vmatpush1.msra.mxu0 0.0
    %173 = vmatprep.subr.mxu0 0.0
    %174 = vmatpush1.msra.mxu0 0.0
    %175 = vmatprep.subr.mxu0 0.0
    %176 = vmatpush1.msra.mxu0 0.0
    %177 = vmatprep.subr.mxu0 0.0
    %178 = vmatpush1.msra.mxu0 0.0
    %179 = vmatprep.subr.mxu0 0.0
    %180 = vmatpush1.msra.mxu0 0.0
    %181 = vmatprep.subr.mxu0 0.0
    %182 = vmatpush1.msra.mxu0 0.0
    %183 = vmatprep.subr.mxu0 0.0
    %184 = vmatpush1.msra.mxu0 0.0
    %185 = vmatprep.subr.mxu0 0.0
    %186 = vmatpush1.msra.mxu0 0.0
    %187 = vmatprep.subr.mxu0 0.0
    %188 = vmatpush1.msra.mxu0 0.0
    %189 = vmatprep.subr.mxu0 0.0
    %190 = vmatpush1.msra.mxu0 0.0
    %191 = vmatprep.subr.mxu0 0.0
    %192 = vmatpush1.msra.mxu0 0.0
    %193 = vmatprep.subr.mxu0 0.0
    %194 = vmatpush1.msra.mxu0 0.0
    %195 = vmatprep.subr.mxu0 0.0
    %196 = vmatpush1.msra.mxu0 0.0
    %197 = vmatprep.subr.mxu0 0.0
    %198 = vmatpush1.msra.mxu0 0.0
    %199 = vmatprep.subr.mxu0 0.0
    %200 = vmatpush1.msra.mxu0 0.0
    %201 = vmatprep.subr.mxu0 0.0
    %202 = vmatpush1.msra.mxu0 0.0
    %203 = vmatprep.subr.mxu0 0.0
    %204 = vmatpush1.msra.mxu0 0.0
    %205 = vmatprep.subr.mxu0 0.0
    %206 = vmatpush1.msra.mxu0 0.0
    %207 = vmatprep.mubr.f32.mxu0 0.0
    %208 = vmatmul.mubr.f32.gmra.mrb[0].mxu0 %v141
    %v209 = vpop.f32.mrb[0].mxu0
    %v210 = vadd.f32 0.0, %v209
    %v211 = vpop.f32.mrb[0].mxu0
    %v212 = vadd.f32 0.0, %v211
    %213 = vdwg.mxu0
    %214 = vmatprep.subr.mxu0 %v110
    %215 = vmatpush1.msra.mxu0 %v109
    %216 = vmatprep.subr.mxu0 %v114
    %217 = vmatpush1.msra.mxu0 %v113
    %218 = vmatprep.subr.mxu0 %v118
    %219 = vmatpush1.msra.mxu0 %v117
    %220 = vmatprep.subr.mxu0 %v122
    %221 = vmatpush1.msra.mxu0 %v121
    %222 = vmatprep.subr.mxu0 %v126
    %223 = vmatpush1.msra.mxu0 %v125
    %224 = vmatprep.subr.mxu0 %v130
    %225 = vmatpush1.msra.mxu0 %v129
    %226 = vmatprep.subr.mxu0 %v134
    %227 = vmatpush1.msra.mxu0 %v133
    %228 = vmatprep.subr.mxu0 %v138
    %229 = vmatpush1.msra.mxu0 %v137
    %230 = vmatprep.subr.mxu0 0.0
    %231 = vmatpush1.msra.mxu0 0.0
    %232 = vmatprep.subr.mxu0 0.0
    %233 = vmatpush1.msra.mxu0 0.0
    %234 = vmatprep.subr.mxu0 0.0
    %235 = vmatpush1.msra.mxu0 0.0
    %236 = vmatprep.subr.mxu0 0.0
    %237 = vmatpush1.msra.mxu0 0.0
    %238 = vmatprep.subr.mxu0 0.0
    %239 = vmatpush1.msra.mxu0 0.0
    %240 = vmatprep.subr.mxu0 0.0
    %241 = vmatpush1.msra.mxu0 0.0
    %242 = vmatprep.subr.mxu0 0.0
    %243 = vmatpush1.msra.mxu0 0.0
    %244 = vmatprep.subr.mxu0 0.0
    %245 = vmatpush1.msra.mxu0 0.0
    %246 = vmatprep.subr.mxu0 0.0
    %247 = vmatpush1.msra.mxu0 0.0
    %248 = vmatprep.subr.mxu0 0.0
    %249 = vmatpush1.msra.mxu0 0.0
    %250 = vmatprep.subr.mxu0 0.0
    %251 = vmatpush1.msra.mxu0 0.0
    %252 = vmatprep.subr.mxu0 0.0
    %253 = vmatpush1.msra.mxu0 0.0
    %254 = vmatprep.subr.mxu0 0.0
    %255 = vmatpush1.msra.mxu0 0.0
    %256 = vmatprep.subr.mxu0 0.0
    %257 = vmatpush1.msra.mxu0 0.0
    %258 = vmatprep.subr.mxu0 0.0
    %259 = vmatpush1.msra.mxu0 0.0
    %260 = vmatprep.subr.mxu0 0.0
    %261 = vmatpush1.msra.mxu0 0.0
    %262 = vmatprep.subr.mxu0 0.0
    %263 = vmatpush1.msra.mxu0 0.0
    %264 = vmatprep.subr.mxu0 0.0
    %265 = vmatpush1.msra.mxu0 0.0
    %266 = vmatprep.subr.mxu0 0.0
    %267 = vmatpush1.msra.mxu0 0.0
    %268 = vmatprep.subr.mxu0 0.0
    %269 = vmatpush1.msra.mxu0 0.0
    %270 = vmatprep.subr.mxu0 0.0
    %271 = vmatpush1.msra.mxu0 0.0
    %272 = vmatprep.subr.mxu0 0.0
    %273 = vmatpush1.msra.mxu0 0.0
    %274 = vmatprep.subr.mxu0 0.0
    %275 = vmatpush1.msra.mxu0 0.0
    %276 = vmatprep.subr.mxu0 0.0
    %277 = vmatpush1.msra.mxu0 0.0
    %278 = vmatprep.mubr.f32.mxu0 0.0
    %279 = vmatmul.mubr.f32.gmra.mrb[0].mxu0 %v141
    %v280 = vpop.f32.mrb[0].mxu0
    %v281 = vadd.f32 0.0, %v280
    %v282 = vpop.f32.mrb[0].mxu0
    %v283 = vadd.f32 0.0, %v282
    %284 = vdwg.mxu0
    %v285 = vmax.f32 %v210, %v281
    %v286 = vmax.f32 %v212, %v283
    %v287 = vld [vmem:[%s2] sm:$0x3]
    %v289 = vlaneseq
    %v290 = vshrl.u32 %v289, 7
    %v291 = vsub.s32 0, %v290
    %v292 = vrot.slane %v287, %v291
    %v293 = vlaneseq
    %v294 = vshrl.u32 %v293, 7
    %v295 = vsub.s32 1, %v294
    %v296 = vrot.slane %v287, %v295
    %v299 = vadd.f32 %v285, %v292
    %v300 = vadd.f32 %v286, %v296
    %v301 = vmax.f32 %v299, 0.0
    %v302 = vmax.f32 %v300, 0.0
    %v303 = vld [vmem:[#allocation4] sm:$0xff]
    %v304 = vld [vmem:[#allocation4 + $0x8] sm:$0xff]
    %v305 = vld [vmem:[#allocation4 + $0x10] sm:$0xff]
    %v306 = vld [vmem:[#allocation4 + $0x18] sm:$0xff]
    %v307 = vld [vmem:[#allocation4 + $0x20] sm:$0xff]
    %v308 = vld [vmem:[#allocation4 + $0x28] sm:$0xff]
    %v309 = vld [vmem:[#allocation4 + $0x30] sm:$0xff]
    %v310 = vld [vmem:[#allocation4 + $0x38] sm:$0xff]
    %v311 = vld [vmem:[#allocation4 + $0x40] sm:$0xff]
    %v312 = vld [vmem:[#allocation4 + $0x48] sm:$0xff]
    %v313 = vld [vmem:[#allocation4 + $0x50] sm:$0xff]
    %v314 = vld [vmem:[#allocation4 + $0x58] sm:$0xff]
    %v315 = vld [vmem:[#allocation4 + $0x60] sm:$0xff]
    %v316 = vld [vmem:[#allocation4 + $0x68] sm:$0xff]
    %v317 = vld [vmem:[#allocation4 + $0x70] sm:$0xff]
    %v318 = vld [vmem:[#allocation4 + $0x78] sm:$0xff]
    %v319 = vld [vmem:[#allocation4 + $0x80] sm:$0xff]
    %v320 = vld [vmem:[#allocation4 + $0x88] sm:$0xff]
    %v321 = vld [vmem:[#allocation4 + $0x90] sm:$0xff]
    %v322 = vld [vmem:[#allocation4 + $0x98] sm:$0xff]
    %v323 = vld [vmem:[#allocation4 + $0xa0] sm:$0xff]
    %v324 = vld [vmem:[#allocation4 + $0xa8] sm:$0xff]
    %v325 = vld [vmem:[#allocation4 + $0xb0] sm:$0xff]
    %v326 = vld [vmem:[#allocation4 + $0xb8] sm:$0xff]
    %v327 = vld [vmem:[#allocation4 + $0xc0] sm:$0xff]
    %v328 = vld [vmem:[#allocation4 + $0xc8] sm:$0xff]
    %v329 = vld [vmem:[#allocation4 + $0xd0] sm:$0xff]
    %v330 = vld [vmem:[#allocation4 + $0xd8] sm:$0xff]
    %v331 = vld [vmem:[#allocation4 + $0xe0] sm:$0xff]
    %v332 = vld [vmem:[#allocation4 + $0xe8] sm:$0xff]
    %v333 = vld [vmem:[#allocation4 + $0xf0] sm:$0xff]
    %v334 = vld [vmem:[#allocation4 + $0xf8] sm:$0xff]
    %v335 = vld [vmem:[#allocation4 + $0x100] sm:$0xff]
    %v336 = vld [vmem:[#allocation4 + $0x108] sm:$0xff]
    %v337 = vld [vmem:[#allocation4 + $0x110] sm:$0xff]
    %v338 = vld [vmem:[#allocation4 + $0x118] sm:$0xff]
    %v339 = vld [vmem:[#allocation4 + $0x120] sm:$0xff]
    %v340 = vld [vmem:[#allocation4 + $0x128] sm:$0xff]
    %v341 = vld [vmem:[#allocation4 + $0x130] sm:$0xff]
    %v342 = vld [vmem:[#allocation4 + $0x138] sm:$0xff]
    %v343 = vld [vmem:[#allocation4 + $0x140] sm:$0xff]
    %v344 = vld [vmem:[#allocation4 + $0x148] sm:$0xff]
    %v345 = vld [vmem:[#allocation4 + $0x150] sm:$0xff]
    %v346 = vld [vmem:[#allocation4 + $0x158] sm:$0xff]
    %v347 = vld [vmem:[#allocation4 + $0x160] sm:$0xff]
    %v348 = vld [vmem:[#allocation4 + $0x168] sm:$0xff]
    %v349 = vld [vmem:[#allocation4 + $0x170] sm:$0xff]
    %v350 = vld [vmem:[#allocation4 + $0x178] sm:$0xff]
    %v351 = vld [vmem:[#allocation4 + $0x180] sm:$0xff]
    %v352 = vld [vmem:[#allocation4 + $0x188] sm:$0xff]
    %v353 = vld [vmem:[#allocation4 + $0x190] sm:$0xff]
    %v354 = vld [vmem:[#allocation4 + $0x198] sm:$0xff]
    %v355 = vld [vmem:[#allocation4 + $0x1a0] sm:$0xff]
    %v356 = vld [vmem:[#allocation4 + $0x1a8] sm:$0xff]
    %v357 = vld [vmem:[#allocation4 + $0x1b0] sm:$0xff]
    %v358 = vld [vmem:[#allocation4 + $0x1b8] sm:$0xff]
    %v359 = vld [vmem:[#allocation4 + $0x1c0] sm:$0xff]
    %v360 = vld [vmem:[#allocation4 + $0x1c8] sm:$0xff]
    %v361 = vld [vmem:[#allocation4 + $0x1d0] sm:$0xff]
    %v362 = vld [vmem:[#allocation4 + $0x1d8] sm:$0xff]
    %v363 = vld [vmem:[#allocation4 + $0x1e0] sm:$0xff]
    %v364 = vld [vmem:[#allocation4 + $0x1e8] sm:$0xff]
    %v365 = vld [vmem:[#allocation4 + $0x1f0] sm:$0xff]
    %v366 = vld [vmem:[#allocation4 + $0x1f8] sm:$0xff]
    %v367 = vld [vmem:[#allocation4 + $0x200] sm:$0xff]
    %v368 = vld [vmem:[#allocation4 + $0x208] sm:$0xff]
    %v369 = vld [vmem:[#allocation4 + $0x210] sm:$0xff]
    %v370 = vld [vmem:[#allocation4 + $0x218] sm:$0xff]
    %v371 = vld [vmem:[#allocation4 + $0x220] sm:$0xff]
    %v372 = vld [vmem:[#allocation4 + $0x228] sm:$0xff]
    %v373 = vld [vmem:[#allocation4 + $0x230] sm:$0xff]
    %v374 = vld [vmem:[#allocation4 + $0x238] sm:$0xff]
    %v375 = vld [vmem:[#allocation4 + $0x240] sm:$0xff]
    %v376 = vld [vmem:[#allocation4 + $0x248] sm:$0xff]
    %v377 = vld [vmem:[#allocation4 + $0x250] sm:$0xff]
    %v378 = vld [vmem:[#allocation4 + $0x258] sm:$0xff]
    %v379 = vld [vmem:[#allocation4 + $0x260] sm:$0xff]
    %v380 = vld [vmem:[#allocation4 + $0x268] sm:$0xff]
    %v381 = vld [vmem:[#allocation4 + $0x270] sm:$0xff]
    %v382 = vld [vmem:[#allocation4 + $0x278] sm:$0xff]
    %v383 = vld [vmem:[#allocation4 + $0x280] sm:$0xff]
    %v384 = vld [vmem:[#allocation4 + $0x288] sm:$0xff]
    %v385 = vld [vmem:[#allocation4 + $0x290] sm:$0xff]
    %v386 = vld [vmem:[#allocation4 + $0x298] sm:$0xff]
    %v387 = vld [vmem:[#allocation4 + $0x2a0] sm:$0xff]
    %v388 = vld [vmem:[#allocation4 + $0x2a8] sm:$0xff]
    %v389 = vld [vmem:[#allocation4 + $0x2b0] sm:$0xff]
    %v390 = vld [vmem:[#allocation4 + $0x2b8] sm:$0xff]
    %v391 = vld [vmem:[#allocation4 + $0x2c0] sm:$0xff]
    %v392 = vld [vmem:[#allocation4 + $0x2c8] sm:$0xff]
    %v393 = vld [vmem:[#allocation4 + $0x2d0] sm:$0xff]
    %v394 = vld [vmem:[#allocation4 + $0x2d8] sm:$0xff]
    %v395 = vld [vmem:[#allocation4 + $0x2e0] sm:$0xff]
    %v396 = vld [vmem:[#allocation4 + $0x2e8] sm:$0xff]
    %v397 = vld [vmem:[#allocation4 + $0x2f0] sm:$0xff]
    %v398 = vld [vmem:[#allocation4 + $0x2f8] sm:$0xff]
    %v399 = vld [vmem:[#allocation4 + $0x300] sm:$0xff]
    %v400 = vld [vmem:[#allocation4 + $0x308] sm:$0xff]
    %v401 = vld [vmem:[#allocation4 + $0x310] sm:$0xff]
    %v402 = vld [vmem:[#allocation4 + $0x318] sm:$0xff]
    %v403 = vld [vmem:[#allocation4 + $0x320] sm:$0xff]
    %v404 = vld [vmem:[#allocation4 + $0x328] sm:$0xff]
    %v405 = vld [vmem:[#allocation4 + $0x330] sm:$0xff]
    %v406 = vld [vmem:[#allocation4 + $0x338] sm:$0xff]
    %v407 = vld [vmem:[#allocation4 + $0x340] sm:$0xff]
    %v408 = vld [vmem:[#allocation4 + $0x348] sm:$0xff]
    %v409 = vld [vmem:[#allocation4 + $0x350] sm:$0xff]
    %v410 = vld [vmem:[#allocation4 + $0x358] sm:$0xff]
    %v411 = vld [vmem:[#allocation4 + $0x360] sm:$0xff]
    %v412 = vld [vmem:[#allocation4 + $0x368] sm:$0xff]
    %v413 = vld [vmem:[#allocation4 + $0x370] sm:$0xff]
    %v414 = vld [vmem:[#allocation4 + $0x378] sm:$0xff]
    %v415 = vld [vmem:[#allocation4 + $0x380] sm:$0xff]
    %v416 = vld [vmem:[#allocation4 + $0x388] sm:$0xff]
    %v417 = vld [vmem:[#allocation4 + $0x390] sm:$0xff]
    %v418 = vld [vmem:[#allocation4 + $0x398] sm:$0xff]
    %v419 = vld [vmem:[#allocation4 + $0x3a0] sm:$0xff]
    %v420 = vld [vmem:[#allocation4 + $0x3a8] sm:$0xff]
    %v421 = vld [vmem:[#allocation4 + $0x3b0] sm:$0xff]
    %v422 = vld [vmem:[#allocation4 + $0x3b8] sm:$0xff]
    %v423 = vld [vmem:[#allocation4 + $0x3c0] sm:$0xff]
    %v424 = vld [vmem:[#allocation4 + $0x3c8] sm:$0xff]
    %v425 = vld [vmem:[#allocation4 + $0x3d0] sm:$0xff]
    %v426 = vld [vmem:[#allocation4 + $0x3d8] sm:$0xff]
    %v427 = vld [vmem:[#allocation4 + $0x3e0] sm:$0xff]
    %v428 = vld [vmem:[#allocation4 + $0x3e8] sm:$0xff]
    %v429 = vld [vmem:[#allocation4 + $0x3f0] sm:$0xff]
    %v430 = vld [vmem:[#allocation4 + $0x3f8] sm:$0xff]
    %431 = vmatprep.subr.mxu0 %v304
    %432 = vmatpush1.msra.mxu0 %v303
    %433 = vmatprep.subr.mxu0 %v308
    %434 = vmatpush1.msra.mxu0 %v307
    %435 = vmatprep.subr.mxu0 %v312
    %436 = vmatpush1.msra.mxu0 %v311
    %437 = vmatprep.subr.mxu0 %v316
    %438 = vmatpush1.msra.mxu0 %v315
    %439 = vmatprep.subr.mxu0 %v320
    %440 = vmatpush1.msra.mxu0 %v319
    %441 = vmatprep.subr.mxu0 %v324
    %442 = vmatpush1.msra.mxu0 %v323
    %443 = vmatprep.subr.mxu0 %v328
    %444 = vmatpush1.msra.mxu0 %v327
    %445 = vmatprep.subr.mxu0 %v332
    %446 = vmatpush1.msra.mxu0 %v331
    %447 = vmatprep.subr.mxu0 %v336
    %448 = vmatpush1.msra.mxu0 %v335
    %449 = vmatprep.subr.mxu0 %v340
    %450 = vmatpush1.msra.mxu0 %v339
    %451 = vmatprep.subr.mxu0 %v344
    %452 = vmatpush1.msra.mxu0 %v343
    %453 = vmatprep.subr.mxu0 %v348
    %454 = vmatpush1.msra.mxu0 %v347
    %455 = vmatprep.subr.mxu0 %v352
    %456 = vmatpush1.msra.mxu0 %v351
    %457 = vmatprep.subr.mxu0 %v356
    %458 = vmatpush1.msra.mxu0 %v355
    %459 = vmatprep.subr.mxu0 %v360
    %460 = vmatpush1.msra.mxu0 %v359
    %461 = vmatprep.subr.mxu0 %v364
    %462 = vmatpush1.msra.mxu0 %v363
    %463 = vmatprep.subr.mxu0 %v368
    %464 = vmatpush1.msra.mxu0 %v367
    %465 = vmatprep.subr.mxu0 %v372
    %466 = vmatpush1.msra.mxu0 %v371
    %467 = vmatprep.subr.mxu0 %v376
    %468 = vmatpush1.msra.mxu0 %v375
    %469 = vmatprep.subr.mxu0 %v380
    %470 = vmatpush1.msra.mxu0 %v379
    %471 = vmatprep.subr.mxu0 %v384
    %472 = vmatpush1.msra.mxu0 %v383
    %473 = vmatprep.subr.mxu0 %v388
    %474 = vmatpush1.msra.mxu0 %v387
    %475 = vmatprep.subr.mxu0 %v392
    %476 = vmatpush1.msra.mxu0 %v391
    %477 = vmatprep.subr.mxu0 %v396
    %478 = vmatpush1.msra.mxu0 %v395
    %479 = vmatprep.subr.mxu0 %v400
    %480 = vmatpush1.msra.mxu0 %v399
    %481 = vmatprep.subr.mxu0 %v404
    %482 = vmatpush1.msra.mxu0 %v403
    %483 = vmatprep.subr.mxu0 %v408
    %484 = vmatpush1.msra.mxu0 %v407
    %485 = vmatprep.subr.mxu0 %v412
    %486 = vmatpush1.msra.mxu0 %v411
    %487 = vmatprep.subr.mxu0 %v416
    %488 = vmatpush1.msra.mxu0 %v415
    %489 = vmatprep.subr.mxu0 %v420
    %490 = vmatpush1.msra.mxu0 %v419
    %491 = vmatprep.subr.mxu0 %v424
    %492 = vmatpush1.msra.mxu0 %v423
    %493 = vmatprep.subr.mxu0 %v428
    %494 = vmatpush1.msra.mxu0 %v427
    %495 = vmatprep.mubr.f32.mxu0 %v302
    %496 = vmatmul.mubr.f32.gmra.mrb[0].mxu0 %v301
    %v497 = vpop.f32.mrb[0].mxu0
    %v498 = vadd.f32 0.0, %v497
    %v499 = vpop.f32.mrb[0].mxu0
    %v500 = vadd.f32 0.0, %v499
    %501 = vdwg.mxu0
    %502 = vmatprep.subr.mxu0 %v306
    %503 = vmatpush1.msra.mxu0 %v305
    %504 = vmatprep.subr.mxu0 %v310
    %505 = vmatpush1.msra.mxu0 %v309
    %506 = vmatprep.subr.mxu0 %v314
    %507 = vmatpush1.msra.mxu0 %v313
    %508 = vmatprep.subr.mxu0 %v318
    %509 = vmatpush1.msra.mxu0 %v317
    %510 = vmatprep.subr.mxu0 %v322
    %511 = vmatpush1.msra.mxu0 %v321
    %512 = vmatprep.subr.mxu0 %v326
    %513 = vmatpush1.msra.mxu0 %v325
    %514 = vmatprep.subr.mxu0 %v330
    %515 = vmatpush1.msra.mxu0 %v329
    %516 = vmatprep.subr.mxu0 %v334
    %517 = vmatpush1.msra.mxu0 %v333
    %518 = vmatprep.subr.mxu0 %v338
    %519 = vmatpush1.msra.mxu0 %v337
    %520 = vmatprep.subr.mxu0 %v342
    %521 = vmatpush1.msra.mxu0 %v341
    %522 = vmatprep.subr.mxu0 %v346
    %523 = vmatpush1.msra.mxu0 %v345
    %524 = vmatprep.subr.mxu0 %v350
    %525 = vmatpush1.msra.mxu0 %v349
    %526 = vmatprep.subr.mxu0 %v354
    %527 = vmatpush1.msra.mxu0 %v353
    %528 = vmatprep.subr.mxu0 %v358
    %529 = vmatpush1.msra.mxu0 %v357
    %530 = vmatprep.subr.mxu0 %v362
    %531 = vmatpush1.msra.mxu0 %v361
    %532 = vmatprep.subr.mxu0 %v366
    %533 = vmatpush1.msra.mxu0 %v365
    %534 = vmatprep.subr.mxu0 %v370
    %535 = vmatpush1.msra.mxu0 %v369
    %536 = vmatprep.subr.mxu0 %v374
    %537 = vmatpush1.msra.mxu0 %v373
    %538 = vmatprep.subr.mxu0 %v378
    %539 = vmatpush1.msra.mxu0 %v377
    %540 = vmatprep.subr.mxu0 %v382
    %541 = vmatpush1.msra.mxu0 %v381
    %542 = vmatprep.subr.mxu0 %v386
    %543 = vmatpush1.msra.mxu0 %v385
    %544 = vmatprep.subr.mxu0 %v390
    %545 = vmatpush1.msra.mxu0 %v389
    %546 = vmatprep.subr.mxu0 %v394
    %547 = vmatpush1.msra.mxu0 %v393
    %548 = vmatprep.subr.mxu0 %v398
    %549 = vmatpush1.msra.mxu0 %v397
    %550 = vmatprep.subr.mxu0 %v402
    %551 = vmatpush1.msra.mxu0 %v401
    %552 = vmatprep.subr.mxu0 %v406
    %553 = vmatpush1.msra.mxu0 %v405
    %554 = vmatprep.subr.mxu0 %v410
    %555 = vmatpush1.msra.mxu0 %v409
    %556 = vmatprep.subr.mxu0 %v414
    %557 = vmatpush1.msra.mxu0 %v413
    %558 = vmatprep.subr.mxu0 %v418
    %559 = vmatpush1.msra.mxu0 %v417
    %560 = vmatprep.subr.mxu0 %v422
    %561 = vmatpush1.msra.mxu0 %v421
    %562 = vmatprep.subr.mxu0 %v426
    %563 = vmatpush1.msra.mxu0 %v425
    %564 = vmatprep.subr.mxu0 %v430
    %565 = vmatpush1.msra.mxu0 %v429
    %566 = vmatprep.mubr.f32.mxu0 %v302
    %567 = vmatmul.mubr.f32.gmra.mrb[0].mxu0 %v301
    %v568 = vpop.f32.mrb[0].mxu0
    %v569 = vadd.f32 0.0, %v568
    %v570 = vpop.f32.mrb[0].mxu0
    %v571 = vadd.f32 0.0, %v570
    %572 = vdwg.mxu0
    %v573 = vmax.f32 %v498, %v569
    %v574 = vmax.f32 %v500, %v571
    %v575 = vld [vmem:[%s4] sm:$0x3]
    %v577 = vlaneseq
    %v578 = vshrl.u32 %v577, 7
    %v579 = vsub.s32 0, %v578
    %v580 = vrot.slane %v575, %v579
    %v581 = vlaneseq
    %v582 = vshrl.u32 %v581, 7
    %v583 = vsub.s32 1, %v582
    %v584 = vrot.slane %v575, %v583
    %v587 = vadd.f32 %v573, %v580
    %v588 = vadd.f32 %v574, %v584
    %v589 = vmax.f32 %v587, 0.0
    %v590 = vmax.f32 %v588, 0.0
    %v591 = vld [vmem:[#allocation6] sm:$0xff]
    %v592 = vld [vmem:[#allocation6 + $0x8] sm:$0xff]
    %v593 = vld [vmem:[#allocation6 + $0x10] sm:$0xff]
    %v594 = vld [vmem:[#allocation6 + $0x18] sm:$0xff]
    %v595 = vld [vmem:[#allocation6 + $0x20] sm:$0xff]
    %v596 = vld [vmem:[#allocation6 + $0x28] sm:$0xff]
    %v597 = vld [vmem:[#allocation6 + $0x30] sm:$0xff]
    %v598 = vld [vmem:[#allocation6 + $0x38] sm:$0xff]
    %v599 = vld [vmem:[#allocation6 + $0x40] sm:$0xff]
    %v600 = vld [vmem:[#allocation6 + $0x48] sm:$0xff]
    %v601 = vld [vmem:[#allocation6 + $0x50] sm:$0xff]
    %v602 = vld [vmem:[#allocation6 + $0x58] sm:$0xff]
    %v603 = vld [vmem:[#allocation6 + $0x60] sm:$0xff]
    %v604 = vld [vmem:[#allocation6 + $0x68] sm:$0xff]
    %v605 = vld [vmem:[#allocation6 + $0x70] sm:$0xff]
    %v606 = vld [vmem:[#allocation6 + $0x78] sm:$0xff]
    %v607 = vld [vmem:[#allocation6 + $0x80] sm:$0xff]
    %v608 = vld [vmem:[#allocation6 + $0x88] sm:$0xff]
    %v609 = vld [vmem:[#allocation6 + $0x90] sm:$0xff]
    %v610 = vld [vmem:[#allocation6 + $0x98] sm:$0xff]
    %v611 = vld [vmem:[#allocation6 + $0xa0] sm:$0xff]
    %v612 = vld [vmem:[#allocation6 + $0xa8] sm:$0xff]
    %v613 = vld [vmem:[#allocation6 + $0xb0] sm:$0xff]
    %v614 = vld [vmem:[#allocation6 + $0xb8] sm:$0xff]
    %v615 = vld [vmem:[#allocation6 + $0xc0] sm:$0xff]
    %v616 = vld [vmem:[#allocation6 + $0xc8] sm:$0xff]
    %v617 = vld [vmem:[#allocation6 + $0xd0] sm:$0xff]
    %v618 = vld [vmem:[#allocation6 + $0xd8] sm:$0xff]
    %v619 = vld [vmem:[#allocation6 + $0xe0] sm:$0xff]
    %v620 = vld [vmem:[#allocation6 + $0xe8] sm:$0xff]
    %v621 = vld [vmem:[#allocation6 + $0xf0] sm:$0xff]
    %v622 = vld [vmem:[#allocation6 + $0xf8] sm:$0xff]
    %v623 = vld [vmem:[%s6] sm:$0x1]
    %v625 = vlaneseq
    %v626 = vshrl.u32 %v625, 7
    %v627 = vsub.s32 0, %v626
    %v628 = vrot.slane %v623, %v627
    %630 = vmatprep.subr.mxu0 0.0
    %631 = vmatpush1.msra.mxu0 %v591
    %632 = vmatprep.subr.mxu0 0.0
    %633 = vmatpush1.msra.mxu0 %v592
    %634 = vmatprep.subr.mxu0 0.0
    %635 = vmatpush1.msra.mxu0 %v593
    %636 = vmatprep.subr.mxu0 0.0
    %637 = vmatpush1.msra.mxu0 %v594
    %638 = vmatprep.subr.mxu0 0.0
    %639 = vmatpush1.msra.mxu0 %v595
    %640 = vmatprep.subr.mxu0 0.0
    %641 = vmatpush1.msra.mxu0 %v596
    %642 = vmatprep.subr.mxu0 0.0
    %643 = vmatpush1.msra.mxu0 %v597
    %644 = vmatprep.subr.mxu0 0.0
    %645 = vmatpush1.msra.mxu0 %v598
    %646 = vmatprep.subr.mxu0 0.0
    %647 = vmatpush1.msra.mxu0 %v599
    %648 = vmatprep.subr.mxu0 0.0
    %649 = vmatpush1.msra.mxu0 %v600
    %650 = vmatprep.subr.mxu0 0.0
    %651 = vmatpush1.msra.mxu0 %v601
    %652 = vmatprep.subr.mxu0 0.0
    %653 = vmatpush1.msra.mxu0 %v602
    %654 = vmatprep.subr.mxu0 0.0
    %655 = vmatpush1.msra.mxu0 %v603
    %656 = vmatprep.subr.mxu0 0.0
    %657 = vmatpush1.msra.mxu0 %v604
    %658 = vmatprep.subr.mxu0 0.0
    %659 = vmatpush1.msra.mxu0 %v605
    %660 = vmatprep.subr.mxu0 0.0
    %661 = vmatpush1.msra.mxu0 %v606
    %662 = vmatprep.subr.mxu0 0.0
    %663 = vmatpush1.msra.mxu0 %v607
    %664 = vmatprep.subr.mxu0 0.0
    %665 = vmatpush1.msra.mxu0 %v608
    %666 = vmatprep.subr.mxu0 0.0
    %667 = vmatpush1.msra.mxu0 %v609
    %668 = vmatprep.subr.mxu0 0.0
    %669 = vmatpush1.msra.mxu0 %v610
    %670 = vmatprep.subr.mxu0 0.0
    %671 = vmatpush1.msra.mxu0 %v611
    %672 = vmatprep.subr.mxu0 0.0
    %673 = vmatpush1.msra.mxu0 %v612
    %674 = vmatprep.subr.mxu0 0.0
    %675 = vmatpush1.msra.mxu0 %v613
    %676 = vmatprep.subr.mxu0 0.0
    %677 = vmatpush1.msra.mxu0 %v614
    %678 = vmatprep.subr.mxu0 0.0
    %679 = vmatpush1.msra.mxu0 %v615
    %680 = vmatprep.subr.mxu0 0.0
    %681 = vmatpush1.msra.mxu0 %v616
    %682 = vmatprep.subr.mxu0 0.0
    %683 = vmatpush1.msra.mxu0 %v617
    %684 = vmatprep.subr.mxu0 0.0
    %685 = vmatpush1.msra.mxu0 %v618
    %686 = vmatprep.subr.mxu0 0.0
    %687 = vmatpush1.msra.mxu0 %v619
    %688 = vmatprep.subr.mxu0 0.0
    %689 = vmatpush1.msra.mxu0 %v620
    %690 = vmatprep.subr.mxu0 0.0
    %691 = vmatpush1.msra.mxu0 %v621
    %692 = vmatprep.subr.mxu0 0.0
    %693 = vmatpush1.msra.mxu0 %v622
    %694 = vmatprep.mubr.f32.mxu0 %v590
    %695 = vmatmul.mubr.f32.gmra.mrb[0].mxu0 %v589
    %v696 = vpop.f32.mrb[0].mxu0
    %v697 = vadd.f32 %v628, %v696
    %v698 = vpop.f32.mrb[0].mxu0
    %699 = vdwg.mxu0
    %v700 = vmax.f32 %v697, 0.0
    %v701 = vld [vmem:[#allocation7] sm:$0xff]
    %v702 = vld [vmem:[#allocation7 + $0x8] sm:$0xff]
    %v703 = vld [vmem:[#allocation7 + $0x10] sm:$0xff]
    %v704 = vld [vmem:[#allocation7 + $0x18] sm:$0xff]
    %v705 = vld [vmem:[#allocation7 + $0x20] sm:$0xff]
    %v706 = vld [vmem:[#allocation7 + $0x28] sm:$0xff]
    %v707 = vld [vmem:[#allocation7 + $0x30] sm:$0xff]
    %v708 = vld [vmem:[#allocation7 + $0x38] sm:$0xff]
    %v709 = vld [vmem:[#allocation7 + $0x40] sm:$0xff]
    %v710 = vld [vmem:[#allocation7 + $0x48] sm:$0xff]
    %v711 = vld [vmem:[#allocation7 + $0x50] sm:$0xff]
    %v712 = vld [vmem:[#allocation7 + $0x58] sm:$0xff]
    %v713 = vld [vmem:[#allocation7 + $0x60] sm:$0xff]
    %v714 = vld [vmem:[#allocation7 + $0x68] sm:$0xff]
    %v715 = vld [vmem:[#allocation7 + $0x70] sm:$0xff]
    %v716 = vld [vmem:[#allocation7 + $0x78] sm:$0xff]
    %v717 = vld [vmem:[%s8] sm:$0x1]
    %v719 = vlaneseq
    %v720 = vshrl.u32 %v719, 7
    %v721 = vsub.s32 0, %v720
    %v722 = vrot.slane %v717, %v721
    %724 = vmatprep.subr.mxu0 0.0
    %725 = vmatpush1.msra.mxu0 %v701
    %726 = vmatprep.subr.mxu0 0.0
    %727 = vmatpush1.msra.mxu0 %v702
    %728 = vmatprep.subr.mxu0 0.0
    %729 = vmatpush1.msra.mxu0 %v703
    %730 = vmatprep.subr.mxu0 0.0
    %731 = vmatpush1.msra.mxu0 %v704
    %732 = vmatprep.subr.mxu0 0.0
    %733 = vmatpush1.msra.mxu0 %v705
    %734 = vmatprep.subr.mxu0 0.0
    %735 = vmatpush1.msra.mxu0 %v706
    %736 = vmatprep.subr.mxu0 0.0
    %737 = vmatpush1.msra.mxu0 %v707
    %738 = vmatprep.subr.mxu0 0.0
    %739 = vmatpush1.msra.mxu0 %v708
    %740 = vmatprep.subr.mxu0 0.0
    %741 = vmatpush1.msra.mxu0 %v709
    %742 = vmatprep.subr.mxu0 0.0
    %743 = vmatpush1.msra.mxu0 %v710
    %744 = vmatprep.subr.mxu0 0.0
    %745 = vmatpush1.msra.mxu0 %v711
    %746 = vmatprep.subr.mxu0 0.0
    %747 = vmatpush1.msra.mxu0 %v712
    %748 = vmatprep.subr.mxu0 0.0
    %749 = vmatpush1.msra.mxu0 %v713
    %750 = vmatprep.subr.mxu0 0.0
    %751 = vmatpush1.msra.mxu0 %v714
    %752 = vmatprep.subr.mxu0 0.0
    %753 = vmatpush1.msra.mxu0 %v715
    %754 = vmatprep.subr.mxu0 0.0
    %755 = vmatpush1.msra.mxu0 %v716
    %756 = vmatprep.subr.mxu0 0.0
    %757 = vmatpush1.msra.mxu0 0.0
    %758 = vmatprep.subr.mxu0 0.0
    %759 = vmatpush1.msra.mxu0 0.0
    %760 = vmatprep.subr.mxu0 0.0
    %761 = vmatpush1.msra.mxu0 0.0
    %762 = vmatprep.subr.mxu0 0.0
    %763 = vmatpush1.msra.mxu0 0.0
    %764 = vmatprep.subr.mxu0 0.0
    %765 = vmatpush1.msra.mxu0 0.0
    %766 = vmatprep.subr.mxu0 0.0
    %767 = vmatpush1.msra.mxu0 0.0
    %768 = vmatprep.subr.mxu0 0.0
    %769 = vmatpush1.msra.mxu0 0.0
    %770 = vmatprep.subr.mxu0 0.0
    %771 = vmatpush1.msra.mxu0 0.0
    %772 = vmatprep.subr.mxu0 0.0
    %773 = vmatpush1.msra.mxu0 0.0
    %774 = vmatprep.subr.mxu0 0.0
    %775 = vmatpush1.msra.mxu0 0.0
    %776 = vmatprep.subr.mxu0 0.0
    %777 = vmatpush1.msra.mxu0 0.0
    %778 = vmatprep.subr.mxu0 0.0
    %779 = vmatpush1.msra.mxu0 0.0
    %780 = vmatprep.subr.mxu0 0.0
    %781 = vmatpush1.msra.mxu0 0.0
    %782 = vmatprep.subr.mxu0 0.0
    %783 = vmatpush1.msra.mxu0 0.0
    %784 = vmatprep.subr.mxu0 0.0
    %785 = vmatpush1.msra.mxu0 0.0
    %786 = vmatprep.subr.mxu0 0.0
    %787 = vmatpush1.msra.mxu0 0.0
    %788 = vmatprep.mubr.f32.mxu0 0.0
    %789 = vmatmul.mubr.f32.gmra.mrb[0].mxu0 %v700
    %v790 = vpop.f32.mrb[0].mxu0
    %v791 = vadd.f32 %v722, %v790
    %v792 = vpop.f32.mrb[0].mxu0
    %793 = vdwg.mxu0
    %v794 = vmax.f32 %v791, 0.0
    %v795 = vld [vmem:[#allocation9] sm:$0xff]
    %v796 = vld [vmem:[#allocation9 + $0x8] sm:$0xff]
    %v797 = vld [vmem:[#allocation9 + $0x10] sm:$0xff]
    %v798 = vld [vmem:[#allocation9 + $0x18] sm:$0xff]
    %v799 = vld [vmem:[#allocation9 + $0x20] sm:$0xff]
    %v800 = vld [vmem:[#allocation9 + $0x28] sm:$0xff]
    %v801 = vld [vmem:[#allocation9 + $0x30] sm:$0xff]
    %v802 = vld [vmem:[#allocation9 + $0x38] sm:$0xff]
    %v803 = vld [vmem:[#allocation9 + $0x40] sm:$0xff]
    %v804 = vld [vmem:[#allocation9 + $0x48] sm:$0xff]
    %v805 = vld [vmem:[#allocation9 + $0x50] sm:$0xff]
    %v806 = vld [vmem:[#allocation9 + $0x58] sm:$0xff]
    %v807 = vld [vmem:[#allocation9 + $0x60] sm:$0xff]
    %v808 = vld [vmem:[#allocation9 + $0x68] sm:$0xff]
    %v809 = vld [vmem:[#allocation9 + $0x70] sm:$0xff]
    %v810 = vld [vmem:[#allocation9 + $0x78] sm:$0xff]
    %v811 = vld [vmem:[%s10] sm:$0x1]
    %v813 = vlaneseq
    %v814 = vshrl.u32 %v813, 7
    %v815 = vsub.s32 0, %v814
    %v816 = vrot.slane %v811, %v815
    %818 = vmatprep.subr.mxu0 0.0
    %819 = vmatpush1.msra.mxu0 %v795
    %820 = vmatprep.subr.mxu0 0.0
    %821 = vmatpush1.msra.mxu0 %v796
    %822 = vmatprep.subr.mxu0 0.0
    %823 = vmatpush1.msra.mxu0 %v797
    %824 = vmatprep.subr.mxu0 0.0
    %825 = vmatpush1.msra.mxu0 %v798
    %826 = vmatprep.subr.mxu0 0.0
    %827 = vmatpush1.msra.mxu0 %v799
    %828 = vmatprep.subr.mxu0 0.0
    %829 = vmatpush1.msra.mxu0 %v800
    %830 = vmatprep.subr.mxu0 0.0
    %831 = vmatpush1.msra.mxu0 %v801
    %832 = vmatprep.subr.mxu0 0.0
    %833 = vmatpush1.msra.mxu0 %v802
    %834 = vmatprep.subr.mxu0 0.0
    %835 = vmatpush1.msra.mxu0 %v803
    %836 = vmatprep.subr.mxu0 0.0
    %837 = vmatpush1.msra.mxu0 %v804
    %838 = vmatprep.subr.mxu0 0.0
    %839 = vmatpush1.msra.mxu0 %v805
    %840 = vmatprep.subr.mxu0 0.0
    %841 = vmatpush1.msra.mxu0 %v806
    %842 = vmatprep.subr.mxu0 0.0
    %843 = vmatpush1.msra.mxu0 %v807
    %844 = vmatprep.subr.mxu0 0.0
    %845 = vmatpush1.msra.mxu0 %v808
    %846 = vmatprep.subr.mxu0 0.0
    %847 = vmatpush1.msra.mxu0 %v809
    %848 = vmatprep.subr.mxu0 0.0
    %849 = vmatpush1.msra.mxu0 %v810
    %850 = vmatprep.subr.mxu0 0.0
    %851 = vmatpush1.msra.mxu0 0.0
    %852 = vmatprep.subr.mxu0 0.0
    %853 = vmatpush1.msra.mxu0 0.0
    %854 = vmatprep.subr.mxu0 0.0
    %855 = vmatpush1.msra.mxu0 0.0
    %856 = vmatprep.subr.mxu0 0.0
    %857 = vmatpush1.msra.mxu0 0.0
    %858 = vmatprep.subr.mxu0 0.0
    %859 = vmatpush1.msra.mxu0 0.0
    %860 = vmatprep.subr.mxu0 0.0
    %861 = vmatpush1.msra.mxu0 0.0
    %862 = vmatprep.subr.mxu0 0.0
    %863 = vmatpush1.msra.mxu0 0.0
    %864 = vmatprep.subr.mxu0 0.0
    %865 = vmatpush1.msra.mxu0 0.0
    %866 = vmatprep.subr.mxu0 0.0
    %867 = vmatpush1.msra.mxu0 0.0
    %868 = vmatprep.subr.mxu0 0.0
    %869 = vmatpush1.msra.mxu0 0.0
    %870 = vmatprep.subr.mxu0 0.0
    %871 = vmatpush1.msra.mxu0 0.0
    %872 = vmatprep.subr.mxu0 0.0
    %873 = vmatpush1.msra.mxu0 0.0
    %874 = vmatprep.subr.mxu0 0.0
    %875 = vmatpush1.msra.mxu0 0.0
    %876 = vmatprep.subr.mxu0 0.0
    %877 = vmatpush1.msra.mxu0 0.0
    %878 = vmatprep.subr.mxu0 0.0
    %879 = vmatpush1.msra.mxu0 0.0
    %880 = vmatprep.subr.mxu0 0.0
    %881 = vmatpush1.msra.mxu0 0.0
    %882 = vmatprep.mubr.f32.mxu0 0.0
    %883 = vmatmul.mubr.f32.gmra.mrb[0].mxu0 %v794
    %v884 = vpop.f32.mrb[0].mxu0
    %v885 = vadd.f32 %v816, %v884
    %v886 = vpop.f32.mrb[0].mxu0
    %887 = vdwg.mxu0
    %888 = vst [vmem:[%s11] sm:$0xff] %v885
    // Predicated region
    $region66: #{forward.1} parent=1 // pred_check
      _
    $region67: #{forward.1} parent=1 // pred_check_branch
      %890 = sbr.rel (0) target = $region69
    $region68: #{forward.1} parent=1 // pred_region
      _
    $region69: #{forward.1} parent=1 // pred_fallthru
      _
    // Predicated region
    $region70: #{forward.1} parent=1 // pred_check
      _
    $region71: #{forward.1} parent=1 // pred_check_branch
      %892 = sbr.rel (0) target = $region73
    $region72: #{forward.1} parent=1 // pred_region
      _
    $region73: #{forward.1} parent=1 // pred_fallthru
      _
    %893 = vsyncpa [#allocation3], 1
    %894 = vsyncpa [#allocation5], 1
    %895 = vsyncpa [#allocation8], 1

</llo_original>
